<compile_context>
chip_gen: v7x
topology: tpu7x:2x2x1
jax: 0.10.0
libtpu: 0.0.40
codegen_flags: <defaults>
</compile_context>

<pallas_src>
import jax
import jax.numpy as jnp
from jax.experimental import pallas as pl
from jax.experimental.pallas import tpu as pltpu


def _leaky_relu(x, slope=0.2):
    return jnp.where(x >= 0, x, slope * x)


# ----------------------- kernel 1: coeffs MLP (one shot) ---------------------


def _coeffs_mlp_kernel(x_ref, w1_ref, b1_ref, w2_ref, b2_ref, w3_ref, b3_ref,
                       w4_ref, b4_ref, coeffs_ref):
    """shared_mlp (Linear+act, Linear+act) -> specific_mlp (Linear+act, Linear)."""
    h = x_ref[...]
    h = _leaky_relu(jnp.dot(h, w1_ref[...], preferred_element_type=jnp.float32)
                    + b1_ref[...])
    h = _leaky_relu(jnp.dot(h, w2_ref[...], preferred_element_type=jnp.float32)
                    + b2_ref[...])
    h = _leaky_relu(jnp.dot(h, w3_ref[...], preferred_element_type=jnp.float32)
                    + b3_ref[...])
    coeffs_ref[...] = (jnp.dot(h, w4_ref[...], preferred_element_type=jnp.float32)
                       + b4_ref[...])                              # (B, n_basis) f32


# ----------------------- kernel 2: blend + idle (streamed) -------------------


def _blend_kernel(coeffs_ref, compT_ref, idle_ref, out_ref):
    """out = coeffs @ comp.T + idle   (bf16 x bf16 -> f32 accumulate on the MXU)."""
    c = coeffs_ref[...].astype(jnp.bfloat16)                        # (B, n_basis)
    out_ref[...] = (jnp.dot(c, compT_ref[...],
                            preferred_element_type=jnp.float32)     # (B, tile) f32
                    + idle_ref[...])


# --------------------------------- wrapper -----------------------------------


def _round_up(a, m):
    return ((a + m - 1) // m) * m


def _detect_num_tensorcores():
    """Best-effort: 2 for megacore / dual-TC generations, else 1."""
    try:
        kind = jax.devices()[0].device_kind.lower()
    except Exception:
        return 1
    for tag in ("v4", "v5p", "v7"):
        if tag in kind:
            return 2
    return 1


def blendshape_forward(x, idle_verts, params, *, num_cores=None, max_tile_n=8192):
    """x: (B, in_ch) f32, idle_verts: (B, V, 3) f32 -> (B, V, 3) f32."""
    B, _ = x.shape
    _, V, _ = idle_verts.shape
    N = V * 3
    compT = params["compT"]                       # (n_basis, V*3) bf16 (comp transposed)
    n_basis = compT.shape[0]
    idle_flat = idle_verts.reshape(B, N)          # reshape only, no padded copies

    # --- 1) coeffs: tiny 4-layer MLP, computed exactly once (grid-less call) ---
    coeffs = pl.pallas_call(
        _coeffs_mlp_kernel,
        out_shape=jax.ShapeDtypeStruct((B, n_basis), jnp.float32),
    )(x,
      params["w1"], params["b1"],
      params["w2"], params["b2"],
      params["w3"], params["b3"],
      params["w4"], params["b4"])

    # --- 2) streamed blend: out = coeffs @ compT + idle ------------------------
    if num_cores is None:
        num_cores = _detect_num_tensorcores()
    if num_cores > 1 and N > 128:
        # Exactly one tile per TensorCore (split streamed HBM traffic).
        tile = min(_round_up(pl.cdiv(N, num_cores), 128), max_tile_n)
    else:
        # Single TC: one whole-N step minimizes per-step pipeline overhead.
        tile = N if N <= max_tile_n else max_tile_n
    if tile != N:
        tile = _round_up(tile, 128)               # partial-tile legality
    n_steps = pl.cdiv(N, tile)

    # Deeper buffering only matters if a huge mesh forces >2 latency-bound steps.
    streamed_kw = {"pipeline_mode": pl.Buffered(3)} if n_steps > 2 else {}

    out_flat = pl.pallas_call(
        _blend_kernel,
        out_shape=jax.ShapeDtypeStruct((B, N), jnp.float32),
        grid=(n_steps,),
        in_specs=[
            pl.BlockSpec((B, n_basis), lambda j: (0, 0)),                 # coeffs (resident)
            pl.BlockSpec((n_basis, tile), lambda j: (0, j), **streamed_kw),  # compT  (streamed, bf16)
            pl.BlockSpec((B, tile), lambda j: (0, j), **streamed_kw),        # idle   (streamed)
        ],
        out_specs=pl.BlockSpec((B, tile), lambda j: (0, j)),
        compiler_params=pltpu.CompilerParams(
            dimension_semantics=("parallel",),     # no cross-step state -> megacore safe
            vmem_limit_bytes=32 * 1024 * 1024,     # explicit (v7x: 64 MiB physical)
        ),
    )(coeffs, compT, idle_flat)

    return out_flat.reshape(B, V, 3)


# -------------------------- reference (pure JAX, f32) -------------------------


def blendshape_reference(x, idle_verts, params):
    hp = jax.lax.Precision.HIGHEST
    h = _leaky_relu(jnp.dot(x, params["w1"], precision=hp) + params["b1"])
    h = _leaky_relu(jnp.dot(h, params["w2"], precision=hp) + params["b2"])
    h = _leaky_relu(jnp.dot(h, params["w3"], precision=hp) + params["b3"])
    coeffs = jnp.dot(h, params["w4"], precision=hp) + params["b4"]
    offsets = jnp.dot(coeffs, params["compT"].astype(jnp.float32), precision=hp)
    B = x.shape[0]
    return offsets.reshape(B, -1, 3) + idle_verts


# ----------------------------------- main -------------------------------------


if __name__ == "__main__":
    # Small, module-consistent shapes.
    B = 2          # batch
    IN_CH = 32     # shared_mlp in_channels
    H1 = 64        # shared_mlp hidden
    DEC = 64       # decoded_size = shared_mlp.out_channels
    SPEC_H = 64    # specific_mlp hidden_channels
    N_BASIS = 16   # config.n_components (FLAME expression comps)
    V = 200        # mesh vertices -> V*3 = 600 (exercises the non-128-multiple N path)

    key = jax.random.PRNGKey(0)
    ks = jax.random.split(key, 12)

    def _init(k, shape, scale, dtype=jnp.float32):
        return (jax.random.normal(k, shape, jnp.float32) * scale).astype(dtype)

    params = {
        # shared_mlp: in_ch -> H1 -> DEC   (last activation = activation)
        "w1": _init(ks[0], (IN_CH, H1), 1.0 / IN_CH ** 0.5),
        "b1": _init(ks[1], (1, H1), 0.01),
        "w2": _init(ks[2], (H1, DEC), 1.0 / H1 ** 0.5),
        "b2": _init(ks[3], (1, DEC), 0.01),
        # specific_mlp (flame): DEC -> SPEC_H -> N_BASIS (identity last)
        "w3": _init(ks[4], (DEC, SPEC_H), 1.0 / DEC ** 0.5),
        "b3": _init(ks[5], (1, SPEC_H), 0.01),
        "w4": _init(ks[6], (SPEC_H, N_BASIS), 1.0 / SPEC_H ** 0.5),
        "b4": _init(ks[7], (1, N_BASIS), 0.01),
        # comp_from_flame: (V*3, N_BASIS); stored transposed + bf16 for the kernel
        # (halves the dominant HBM read, native bf16 MXU path).
        "compT": _init(ks[8], (N_BASIS, V * 3), 0.05, dtype=jnp.bfloat16),
    }

    x = jax.random.normal(ks[9], (B, IN_CH), jnp.float32)
    idle_verts = jax.random.normal(ks[10], (B, V, 3), jnp.float32) * 0.1

    out = blendshape_forward(x, idle_verts, params)
    out = jax.block_until_ready(out)

    ref = blendshape_reference(x, idle_verts, params)
    assert out.shape == (B, V, 3)
    # Tolerance reflects the bf16 blend path (coeffs + comp fed to the MXU as
    # bf16, f32 accumulation); outputs are O(0.3), so 1e-2 is ~bf16-level error.
    assert jnp.allclose(out, ref, atol=1e-2, rtol=1e-2), "mismatch vs JAX reference"

    print("KERNEL_OK")
</pallas_src>

<mosaic_0001>
module attributes {stable_mosaic.version = 11 : i64} {
  func.func @_coeffs_mlp_kernel(%arg0: memref<2x32xf32, #tpu.memory_space<vmem>>, %arg1: memref<32x64xf32, #tpu.memory_space<vmem>>, %arg2: memref<1x64xf32, #tpu.memory_space<vmem>>, %arg3: memref<64x64xf32, #tpu.memory_space<vmem>>, %arg4: memref<1x64xf32, #tpu.memory_space<vmem>>, %arg5: memref<64x64xf32, #tpu.memory_space<vmem>>, %arg6: memref<1x64xf32, #tpu.memory_space<vmem>>, %arg7: memref<64x16xf32, #tpu.memory_space<vmem>>, %arg8: memref<1x16xf32, #tpu.memory_space<vmem>>, %arg9: memref<2x16xf32, #tpu.memory_space<vmem>>) attributes {dimension_semantics = [], scalar_prefetch = 0 : i64, scratch_operands = 0 : i64, tpu.core_type = #tpu.core_type<tc>} {
    %c0 = arith.constant 0 : index
    %c0_0 = arith.constant 0 : index
    %0 = vector.load %arg0[%c0, %c0_0] : memref<2x32xf32, #tpu.memory_space<vmem>>, vector<2x32xf32>
    %c0_1 = arith.constant 0 : index
    %c0_2 = arith.constant 0 : index
    %1 = vector.load %arg1[%c0_1, %c0_2] : memref<32x64xf32, #tpu.memory_space<vmem>>, vector<32x64xf32>
    %cst = arith.constant dense<0.000000e+00> : vector<2x64xf32>
    %2 = tpu.matmul %0, %1, %cst {dimension_numbers = #tpu.dot_dimension_numbers<[1], [0], [0], [1], [0, 0, 1, 1], [], []>} : vector<2x32xf32>, vector<32x64xf32>, vector<2x64xf32> -> vector<2x64xf32>
    %c0_3 = arith.constant 0 : index
    %c0_4 = arith.constant 0 : index
    %3 = vector.load %arg2[%c0_3, %c0_4] : memref<1x64xf32, #tpu.memory_space<vmem>>, vector<1x64xf32>
    %4 = vector.broadcast %3 : vector<1x64xf32> to vector<2x64xf32>
    %5 = arith.addf %2, %4 : vector<2x64xf32>
    %cst_5 = arith.constant 0.000000e+00 : f32
    %6 = vector.broadcast %cst_5 : f32 to vector<2x64xf32>
    %7 = arith.cmpf oge, %5, %6 : vector<2x64xf32>
    %cst_6 = arith.constant 2.000000e-01 : f32
    %8 = vector.broadcast %cst_6 : f32 to vector<2x64xf32>
    %9 = arith.mulf %8, %5 : vector<2x64xf32>
    %10 = arith.select %7, %5, %9 : vector<2x64xi1>, vector<2x64xf32>
    %c0_7 = arith.constant 0 : index
    %c0_8 = arith.constant 0 : index
    %11 = vector.load %arg3[%c0_7, %c0_8] : memref<64x64xf32, #tpu.memory_space<vmem>>, vector<64x64xf32>
    %cst_9 = arith.constant dense<0.000000e+00> : vector<2x64xf32>
    %12 = tpu.matmul %10, %11, %cst_9 {dimension_numbers = #tpu.dot_dimension_numbers<[1], [0], [0], [1], [0, 0, 1, 1], [], []>} : vector<2x64xf32>, vector<64x64xf32>, vector<2x64xf32> -> vector<2x64xf32>
    %c0_10 = arith.constant 0 : index
    %c0_11 = arith.constant 0 : index
    %13 = vector.load %arg4[%c0_10, %c0_11] : memref<1x64xf32, #tpu.memory_space<vmem>>, vector<1x64xf32>
    %14 = vector.broadcast %13 : vector<1x64xf32> to vector<2x64xf32>
    %15 = arith.addf %12, %14 : vector<2x64xf32>
    %cst_12 = arith.constant 0.000000e+00 : f32
    %16 = vector.broadcast %cst_12 : f32 to vector<2x64xf32>
    %17 = arith.cmpf oge, %15, %16 : vector<2x64xf32>
    %cst_13 = arith.constant 2.000000e-01 : f32
    %18 = vector.broadcast %cst_13 : f32 to vector<2x64xf32>
    %19 = arith.mulf %18, %15 : vector<2x64xf32>
    %20 = arith.select %17, %15, %19 : vector<2x64xi1>, vector<2x64xf32>
    %c0_14 = arith.constant 0 : index
    %c0_15 = arith.constant 0 : index
    %21 = vector.load %arg5[%c0_14, %c0_15] : memref<64x64xf32, #tpu.memory_space<vmem>>, vector<64x64xf32>
    %cst_16 = arith.constant dense<0.000000e+00> : vector<2x64xf32>
    %22 = tpu.matmul %20, %21, %cst_16 {dimension_numbers = #tpu.dot_dimension_numbers<[1], [0], [0], [1], [0, 0, 1, 1], [], []>} : vector<2x64xf32>, vector<64x64xf32>, vector<2x64xf32> -> vector<2x64xf32>
    %c0_17 = arith.constant 0 : index
    %c0_18 = arith.constant 0 : index
    %23 = vector.load %arg6[%c0_17, %c0_18] : memref<1x64xf32, #tpu.memory_space<vmem>>, vector<1x64xf32>
    %24 = vector.broadcast %23 : vector<1x64xf32> to vector<2x64xf32>
    %25 = arith.addf %22, %24 : vector<2x64xf32>
    %cst_19 = arith.constant 0.000000e+00 : f32
    %26 = vector.broadcast %cst_19 : f32 to vector<2x64xf32>
    %27 = arith.cmpf oge, %25, %26 : vector<2x64xf32>
    %cst_20 = arith.constant 2.000000e-01 : f32
    %28 = vector.broadcast %cst_20 : f32 to vector<2x64xf32>
    %29 = arith.mulf %28, %25 : vector<2x64xf32>
    %30 = arith.select %27, %25, %29 : vector<2x64xi1>, vector<2x64xf32>
    %c0_21 = arith.constant 0 : index
    %c0_22 = arith.constant 0 : index
    %31 = vector.load %arg7[%c0_21, %c0_22] : memref<64x16xf32, #tpu.memory_space<vmem>>, vector<64x16xf32>
    %cst_23 = arith.constant dense<0.000000e+00> : vector<2x16xf32>
    %32 = tpu.matmul %30, %31, %cst_23 {dimension_numbers = #tpu.dot_dimension_numbers<[1], [0], [0], [1], [0, 0, 1, 1], [], []>} : vector<2x64xf32>, vector<64x16xf32>, vector<2x16xf32> -> vector<2x16xf32>
    %c0_24 = arith.constant 0 : index
    %c0_25 = arith.constant 0 : index
    %33 = vector.load %arg8[%c0_24, %c0_25] : memref<1x16xf32, #tpu.memory_space<vmem>>, vector<1x16xf32>
    %34 = vector.broadcast %33 : vector<1x16xf32> to vector<2x16xf32>
    %35 = arith.addf %32, %34 : vector<2x16xf32>
    %c0_26 = arith.constant 0 : index
    %c0_27 = arith.constant 0 : index
    %36 = vector.load %arg9[%c0_26, %c0_27] : memref<2x16xf32, #tpu.memory_space<vmem>>, vector<2x16xf32>
    tpu.vector_store %arg9[%c0_26, %c0_27], %35 {strides = array<i32>} : memref<2x16xf32, #tpu.memory_space<vmem>>, vector<2x16xf32>,
    return
  }
}

</mosaic_0001>

<llo_original>
// kernel: tpu_custom_call.1
$region0: #{tpu_custom_call.1}
  #allocation0 [shape = 'u32[]', space=smem, size = 0x4, offset = 0x4, fixed_abs, tag = 'smem constant byte address 0x4 - core index']
  #allocation1 [shape = 'u32[144,128]{1,0:T(1,128)}', space=vmem, size = 0x12000, scoped, tag = 'internal scratch']
  %s0 = inlined_call_operand.vmem [shape: f32[2,32], index: 0, kind: input, shape index: {}]
  %s1 = inlined_call_operand.hbm [shape: f32[32,64], index: 1, kind: input, shape index: {}]
  %s2 = inlined_call_operand.vmem [shape: f32[1,64], index: 2, kind: input, shape index: {}]
  %s3 = inlined_call_operand.vmem [shape: f32[64,64], index: 3, kind: input, shape index: {}]
  %s4 = inlined_call_operand.vmem [shape: f32[1,64], index: 4, kind: input, shape index: {}]
  %s5 = inlined_call_operand.hbm [shape: f32[64,64], index: 5, kind: input, shape index: {}]
  %s6 = inlined_call_operand.vmem [shape: f32[1,64], index: 6, kind: input, shape index: {}]
  %s7 = inlined_call_operand.vmem [shape: f32[64,16], index: 7, kind: input, shape index: {}]
  %s8 = inlined_call_operand.vmem [shape: f32[1,16], index: 8, kind: input, shape index: {}]
  %s9 = inlined_call_operand.hbm [shape: f32[2,16], index: 9, kind: output, shape index: {}]
  %s10 = sld [smem:[#allocation0]]
  $region54: #{tpu_custom_call.1} parent=0
    _
  %s12 = ssub.s32 1, %s10
  %s13 = scalar_select 0, %s12, %s10
  $region1: #{tpu_custom_call.1} parent=0
    #allocation2 [shape = 'u8[16384]{0}', space=vmem, size = 0x4000, scoped, tag = 'input window, operand 1, single buffered']
    #allocation3 [shape = 's32[1]{0}', space=sflag, size = 0x4, scoped, tag = 'scoped memory for tpu_custom_call.1']
    #allocation4 [shape = 's32[1]{0}', space=sflag, size = 0x4, scoped, tag = 'scoped memory for tpu_custom_call.1']
    #allocation5 [shape = 'u8[32768]{0}', space=vmem, size = 0x8000, scoped, tag = 'input window, operand 5, single buffered']
    #allocation6 [shape = 's32[1]{0}', space=sflag, size = 0x4, scoped, tag = 'scoped memory for tpu_custom_call.1']
    #allocation7 [shape = 'u8[1024]{0}', space=vmem, size = 0x400, scoped, tag = 'output window, operand 0, single buffered']
    %14 = vsyncpa [#allocation3], 0
    %15 = vsyncpa [#allocation6], 0
    %16 = vsyncpa [#allocation4], 0
    // Predicated region
    $region2: #{tpu_custom_call.1} parent=1 // pred_check
      _
    $region3: #{tpu_custom_call.1} parent=1 // pred_check_branch
      %18 = sbr.rel (0) target = $region5
    $region4: #{tpu_custom_call.1} parent=1 // pred_region
      _
    $region5: #{tpu_custom_call.1} parent=1 // pred_fallthru
      _
    // Predicated region
    $region6: #{tpu_custom_call.1} parent=1 // pred_check
      _
    $region7: #{tpu_custom_call.1} parent=1 // pred_check_branch
      %20 = sbr.rel (0) target = $region9
    $region8: #{tpu_custom_call.1} parent=1 // pred_region
      %s22 = ssub.s32 512, 512
      %23 = vsyncadd [#allocation3], %s22
      %s24 = sshll.u32 [#allocation2], 4
      %s25 = int_to_ptr.vmem [resolvable:$true] %s24
      %30 = dma.hbm_to_vmem [thread:$0]  %s1, 512, %s25, [#allocation3], 128, 128, 8
    $region9: #{tpu_custom_call.1} parent=1 // pred_fallthru
      _
    // Predicated region
    $region10: #{tpu_custom_call.1} parent=1 // pred_check
      _
    $region11: #{tpu_custom_call.1} parent=1 // pred_check_branch
      %32 = sbr.rel (0) target = $region13
    $region12: #{tpu_custom_call.1} parent=1 // pred_region
      _
    $region13: #{tpu_custom_call.1} parent=1 // pred_fallthru
      _
    // Predicated region
    $region14: #{tpu_custom_call.1} parent=1 // pred_check
      _
    $region15: #{tpu_custom_call.1} parent=1 // pred_check_branch
      %34 = sbr.rel (0) target = $region17
    $region16: #{tpu_custom_call.1} parent=1 // pred_region
      _
    $region17: #{tpu_custom_call.1} parent=1 // pred_fallthru
      _
    // Predicated region
    $region18: #{tpu_custom_call.1} parent=1 // pred_check
      _
    $region19: #{tpu_custom_call.1} parent=1 // pred_check_branch
      %36 = sbr.rel (0) target = $region21
    $region20: #{tpu_custom_call.1} parent=1 // pred_region
      _
    $region21: #{tpu_custom_call.1} parent=1 // pred_fallthru
      _
    // Predicated region
    $region22: #{tpu_custom_call.1} parent=1 // pred_check
      _
    $region23: #{tpu_custom_call.1} parent=1 // pred_check_branch
      %38 = sbr.rel (0) target = $region25
    $region24: #{tpu_custom_call.1} parent=1 // pred_region
      %s40 = ssub.s32 1024, 1024
      %41 = vsyncadd [#allocation6], %s40
      %s42 = sshll.u32 [#allocation5], 4
      %s43 = int_to_ptr.vmem [resolvable:$true] %s42
      %48 = dma.hbm_to_vmem [thread:$0]  %s5, 1024, %s43, [#allocation6], 128, 128, 8
    $region25: #{tpu_custom_call.1} parent=1 // pred_fallthru
      _
    // Predicated region
    $region26: #{tpu_custom_call.1} parent=1 // pred_check
      _
    $region27: #{tpu_custom_call.1} parent=1 // pred_check_branch
      %50 = sbr.rel (0) target = $region29
    $region28: #{tpu_custom_call.1} parent=1 // pred_region
      _
    $region29: #{tpu_custom_call.1} parent=1 // pred_fallthru
      _
    // Predicated region
    $region30: #{tpu_custom_call.1} parent=1 // pred_check
      _
    $region31: #{tpu_custom_call.1} parent=1 // pred_check_branch
      %52 = sbr.rel (0) target = $region33
    $region32: #{tpu_custom_call.1} parent=1 // pred_region
      _
    $region33: #{tpu_custom_call.1} parent=1 // pred_fallthru
      _
    // Predicated region
    $region34: #{tpu_custom_call.1} parent=1 // pred_check
      _
    $region35: #{tpu_custom_call.1} parent=1 // pred_check_branch
      %54 = sbr.rel (0) target = $region37
    $region36: #{tpu_custom_call.1} parent=1 // pred_region
      _
    $region37: #{tpu_custom_call.1} parent=1 // pred_fallthru
      _
    // Predicated region
    $region38: #{tpu_custom_call.1} parent=1 // pred_check
      _
    $region39: #{tpu_custom_call.1} parent=1 // pred_check_branch
      %56 = sbr.rel (0) target = $region41
    $region40: #{tpu_custom_call.1} parent=1 // pred_region
      %57 = dma.done [#allocation3], 512
    $region41: #{tpu_custom_call.1} parent=1 // pred_fallthru
      _
    // Predicated region
    $region42: #{tpu_custom_call.1} parent=1 // pred_check
      _
    $region43: #{tpu_custom_call.1} parent=1 // pred_check_branch
      %59 = sbr.rel (0) target = $region45
    $region44: #{tpu_custom_call.1} parent=1 // pred_region
      %60 = dma.done [#allocation6], 1024
    $region45: #{tpu_custom_call.1} parent=1 // pred_fallthru
      _
    %v61 = vld [vmem:[%s0] sm:$0x3]
    %v62 = vld [vmem:[#allocation2] sm:$0xff]
    %v63 = vld [vmem:[#allocation2 + $0x8] sm:$0xff]
    %v64 = vld [vmem:[#allocation2 + $0x10] sm:$0xff]
    %v65 = vld [vmem:[#allocation2 + $0x18] sm:$0xff]
    %v66 = vld [vmem:[%s2] sm:$0x1]
    %v68 = vlaneseq
    %v69 = vshrl.u32 %v68, 7
    %v70 = vsub.s32 0, %v69
    %v71 = vrot.slane %v66, %v70
    %vm73 = vcmask 261120
    %v75 = vsel %vm73, %v61, 0
    %77 = vmatprep.subr.mxu0 0.0
    %78 = vmatpush1.msra.mxu0 %v62
    %79 = vmatprep.subr.mxu0 0.0
    %80 = vmatpush1.msra.mxu0 %v63
    %81 = vmatprep.subr.mxu0 0.0
    %82 = vmatpush1.msra.mxu0 %v64
    %83 = vmatprep.subr.mxu0 0.0
    %84 = vmatpush1.msra.mxu0 %v65
    %85 = vmatprep.subr.mxu0 0.0
    %86 = vmatpush1.msra.mxu0 0.0
    %87 = vmatprep.subr.mxu0 0.0
    %88 = vmatpush1.msra.mxu0 0.0
    %89 = vmatprep.subr.mxu0 0.0
    %90 = vmatpush1.msra.mxu0 0.0
    %91 = vmatprep.subr.mxu0 0.0
    %92 = vmatpush1.msra.mxu0 0.0
    %93 = vmatprep.subr.mxu0 0.0
    %94 = vmatpush1.msra.mxu0 0.0
    %95 = vmatprep.subr.mxu0 0.0
    %96 = vmatpush1.msra.mxu0 0.0
    %97 = vmatprep.subr.mxu0 0.0
    %98 = vmatpush1.msra.mxu0 0.0
    %99 = vmatprep.subr.mxu0 0.0
    %100 = vmatpush1.msra.mxu0 0.0
    %101 = vmatprep.subr.mxu0 0.0
    %102 = vmatpush1.msra.mxu0 0.0
    %103 = vmatprep.subr.mxu0 0.0
    %104 = vmatpush1.msra.mxu0 0.0
    %105 = vmatprep.subr.mxu0 0.0
    %106 = vmatpush1.msra.mxu0 0.0
    %107 = vmatprep.subr.mxu0 0.0
    %108 = vmatpush1.msra.mxu0 0.0
    %109 = vmatprep.subr.mxu0 0.0
    %110 = vmatpush1.msra.mxu0 0.0
    %111 = vmatprep.subr.mxu0 0.0
    %112 = vmatpush1.msra.mxu0 0.0
    %113 = vmatprep.subr.mxu0 0.0
    %114 = vmatpush1.msra.mxu0 0.0
    %115 = vmatprep.subr.mxu0 0.0
    %116 = vmatpush1.msra.mxu0 0.0
    %117 = vmatprep.subr.mxu0 0.0
    %118 = vmatpush1.msra.mxu0 0.0
    %119 = vmatprep.subr.mxu0 0.0
    %120 = vmatpush1.msra.mxu0 0.0
    %121 = vmatprep.subr.mxu0 0.0
    %122 = vmatpush1.msra.mxu0 0.0
    %123 = vmatprep.subr.mxu0 0.0
    %124 = vmatpush1.msra.mxu0 0.0
    %125 = vmatprep.subr.mxu0 0.0
    %126 = vmatpush1.msra.mxu0 0.0
    %127 = vmatprep.subr.mxu0 0.0
    %128 = vmatpush1.msra.mxu0 0.0
    %129 = vmatprep.subr.mxu0 0.0
    %130 = vmatpush1.msra.mxu0 0.0
    %131 = vmatprep.subr.mxu0 0.0
    %132 = vmatpush1.msra.mxu0 0.0
    %133 = vmatprep.subr.mxu0 0.0
    %134 = vmatpush1.msra.mxu0 0.0
    %135 = vmatprep.subr.mxu0 0.0
    %136 = vmatpush1.msra.mxu0 0.0
    %137 = vmatprep.subr.mxu0 0.0
    %138 = vmatpush1.msra.mxu0 0.0
    %139 = vmatprep.subr.mxu0 0.0
    %140 = vmatpush1.msra.mxu0 0.0
    %141 = vmatprep.mubr.f32.mxu0 0.0
    %142 = vmatmul.mubr.f32.gmra.mrb[0].mxu0 %v75
    %v143 = vpop.f32.mrb[0].mxu0
    %v144 = vadd.f32 %v71, %v143
    %v145 = vpop.f32.mrb[0].mxu0
    %146 = vdwg.mxu0
    %vm147 = vcmp.ge.f32.partialorder %v144, 0.0
    %v148 = vmul.f32 %v144, 0.2
    %v149 = vsel %vm147, %v144, %v148
    %v150 = vld [vmem:[%s3] sm:$0xff]
    %v151 = vld [vmem:[%s3 + $0x8] sm:$0xff]
    %v152 = vld [vmem:[%s3 + $0x10] sm:$0xff]
    %v153 = vld [vmem:[%s3 + $0x18] sm:$0xff]
    %v154 = vld [vmem:[%s3 + $0x20] sm:$0xff]
    %v155 = vld [vmem:[%s3 + $0x28] sm:$0xff]
    %v156 = vld [vmem:[%s3 + $0x30] sm:$0xff]
    %v157 = vld [vmem:[%s3 + $0x38] sm:$0xff]
    %v158 = vld [vmem:[%s4] sm:$0x1]
    %v160 = vlaneseq
    %v161 = vshrl.u32 %v160, 7
    %v162 = vsub.s32 0, %v161
    %v163 = vrot.slane %v158, %v162
    %vm165 = vcmask 523264
    %v167 = vsel %vm165, %v149, 0
    %169 = vmatprep.subr.mxu0 0.0
    %170 = vmatpush1.msra.mxu0 %v150
    %171 = vmatprep.subr.mxu0 0.0
    %172 = vmatpush1.msra.mxu0 %v151
    %173 = vmatprep.subr.mxu0 0.0
    %174 = vmatpush1.msra.mxu0 %v152
    %175 = vmatprep.subr.mxu0 0.0
    %176 = vmatpush1.msra.mxu0 %v153
    %177 = vmatprep.subr.mxu0 0.0
    %178 = vmatpush1.msra.mxu0 %v154
    %179 = vmatprep.subr.mxu0 0.0
    %180 = vmatpush1.msra.mxu0 %v155
    %181 = vmatprep.subr.mxu0 0.0
    %182 = vmatpush1.msra.mxu0 %v156
    %183 = vmatprep.subr.mxu0 0.0
    %184 = vmatpush1.msra.mxu0 %v157
    %185 = vmatprep.subr.mxu0 0.0
    %186 = vmatpush1.msra.mxu0 0.0
    %187 = vmatprep.subr.mxu0 0.0
    %188 = vmatpush1.msra.mxu0 0.0
    %189 = vmatprep.subr.mxu0 0.0
    %190 = vmatpush1.msra.mxu0 0.0
    %191 = vmatprep.subr.mxu0 0.0
    %192 = vmatpush1.msra.mxu0 0.0
    %193 = vmatprep.subr.mxu0 0.0
    %194 = vmatpush1.msra.mxu0 0.0
    %195 = vmatprep.subr.mxu0 0.0
    %196 = vmatpush1.msra.mxu0 0.0
    %197 = vmatprep.subr.mxu0 0.0
    %198 = vmatpush1.msra.mxu0 0.0
    %199 = vmatprep.subr.mxu0 0.0
    %200 = vmatpush1.msra.mxu0 0.0
    %201 = vmatprep.subr.mxu0 0.0
    %202 = vmatpush1.msra.mxu0 0.0
    %203 = vmatprep.subr.mxu0 0.0
    %204 = vmatpush1.msra.mxu0 0.0
    %205 = vmatprep.subr.mxu0 0.0
    %206 = vmatpush1.msra.mxu0 0.0
    %207 = vmatprep.subr.mxu0 0.0
    %208 = vmatpush1.msra.mxu0 0.0
    %209 = vmatprep.subr.mxu0 0.0
    %210 = vmatpush1.msra.mxu0 0.0
    %211 = vmatprep.subr.mxu0 0.0
    %212 = vmatpush1.msra.mxu0 0.0
    %213 = vmatprep.subr.mxu0 0.0
    %214 = vmatpush1.msra.mxu0 0.0
    %215 = vmatprep.subr.mxu0 0.0
    %216 = vmatpush1.msra.mxu0 0.0
    %217 = vmatprep.subr.mxu0 0.0
    %218 = vmatpush1.msra.mxu0 0.0
    %219 = vmatprep.subr.mxu0 0.0
    %220 = vmatpush1.msra.mxu0 0.0
    %221 = vmatprep.subr.mxu0 0.0
    %222 = vmatpush1.msra.mxu0 0.0
    %223 = vmatprep.subr.mxu0 0.0
    %224 = vmatpush1.msra.mxu0 0.0
    %225 = vmatprep.subr.mxu0 0.0
    %226 = vmatpush1.msra.mxu0 0.0
    %227 = vmatprep.subr.mxu0 0.0
    %228 = vmatpush1.msra.mxu0 0.0
    %229 = vmatprep.subr.mxu0 0.0
    %230 = vmatpush1.msra.mxu0 0.0
    %231 = vmatprep.subr.mxu0 0.0
    %232 = vmatpush1.msra.mxu0 0.0
    %233 = vmatprep.mubr.f32.mxu0 0.0
    %234 = vmatmul.mubr.f32.gmra.mrb[0].mxu0 %v167
    %v235 = vpop.f32.mrb[0].mxu0
    %v236 = vadd.f32 %v163, %v235
    %v237 = vpop.f32.mrb[0].mxu0
    %238 = vdwg.mxu0
    %vm239 = vcmp.ge.f32.partialorder %v236, 0.0
    %v240 = vmul.f32 %v236, 0.2
    %v241 = vsel %vm239, %v236, %v240
    %v242 = vld [vmem:[#allocation5] sm:$0xff]
    %v243 = vld [vmem:[#allocation5 + $0x8] sm:$0xff]
    %v244 = vld [vmem:[#allocation5 + $0x10] sm:$0xff]
    %v245 = vld [vmem:[#allocation5 + $0x18] sm:$0xff]
    %v246 = vld [vmem:[#allocation5 + $0x20] sm:$0xff]
    %v247 = vld [vmem:[#allocation5 + $0x28] sm:$0xff]
    %v248 = vld [vmem:[#allocation5 + $0x30] sm:$0xff]
    %v249 = vld [vmem:[#allocation5 + $0x38] sm:$0xff]
    %v250 = vld [vmem:[%s6] sm:$0x1]
    %v252 = vlaneseq
    %v253 = vshrl.u32 %v252, 7
    %v254 = vsub.s32 0, %v253
    %v255 = vrot.slane %v250, %v254
    %v258 = vsel %vm165, %v241, 0
    %260 = vmatprep.subr.mxu0 0.0
    %261 = vmatpush1.msra.mxu0 %v242
    %262 = vmatprep.subr.mxu0 0.0
    %263 = vmatpush1.msra.mxu0 %v243
    %264 = vmatprep.subr.mxu0 0.0
    %265 = vmatpush1.msra.mxu0 %v244
    %266 = vmatprep.subr.mxu0 0.0
    %267 = vmatpush1.msra.mxu0 %v245
    %268 = vmatprep.subr.mxu0 0.0
    %269 = vmatpush1.msra.mxu0 %v246
    %270 = vmatprep.subr.mxu0 0.0
    %271 = vmatpush1.msra.mxu0 %v247
    %272 = vmatprep.subr.mxu0 0.0
    %273 = vmatpush1.msra.mxu0 %v248
    %274 = vmatprep.subr.mxu0 0.0
    %275 = vmatpush1.msra.mxu0 %v249
    %276 = vmatprep.subr.mxu0 0.0
    %277 = vmatpush1.msra.mxu0 0.0
    %278 = vmatprep.subr.mxu0 0.0
    %279 = vmatpush1.msra.mxu0 0.0
    %280 = vmatprep.subr.mxu0 0.0
    %281 = vmatpush1.msra.mxu0 0.0
    %282 = vmatprep.subr.mxu0 0.0
    %283 = vmatpush1.msra.mxu0 0.0
    %284 = vmatprep.subr.mxu0 0.0
    %285 = vmatpush1.msra.mxu0 0.0
    %286 = vmatprep.subr.mxu0 0.0
    %287 = vmatpush1.msra.mxu0 0.0
    %288 = vmatprep.subr.mxu0 0.0
    %289 = vmatpush1.msra.mxu0 0.0
    %290 = vmatprep.subr.mxu0 0.0
    %291 = vmatpush1.msra.mxu0 0.0
    %292 = vmatprep.subr.mxu0 0.0
    %293 = vmatpush1.msra.mxu0 0.0
    %294 = vmatprep.subr.mxu0 0.0
    %295 = vmatpush1.msra.mxu0 0.0
    %296 = vmatprep.subr.mxu0 0.0
    %297 = vmatpush1.msra.mxu0 0.0
    %298 = vmatprep.subr.mxu0 0.0
    %299 = vmatpush1.msra.mxu0 0.0
    %300 = vmatprep.subr.mxu0 0.0
    %301 = vmatpush1.msra.mxu0 0.0
    %302 = vmatprep.subr.mxu0 0.0
    %303 = vmatpush1.msra.mxu0 0.0
    %304 = vmatprep.subr.mxu0 0.0
    %305 = vmatpush1.msra.mxu0 0.0
    %306 = vmatprep.subr.mxu0 0.0
    %307 = vmatpush1.msra.mxu0 0.0
    %308 = vmatprep.subr.mxu0 0.0
    %309 = vmatpush1.msra.mxu0 0.0
    %310 = vmatprep.subr.mxu0 0.0
    %311 = vmatpush1.msra.mxu0 0.0
    %312 = vmatprep.subr.mxu0 0.0
    %313 = vmatpush1.msra.mxu0 0.0
    %314 = vmatprep.subr.mxu0 0.0
    %315 = vmatpush1.msra.mxu0 0.0
    %316 = vmatprep.subr.mxu0 0.0
    %317 = vmatpush1.msra.mxu0 0.0
    %318 = vmatprep.subr.mxu0 0.0
    %319 = vmatpush1.msra.mxu0 0.0
    %320 = vmatprep.subr.mxu0 0.0
    %321 = vmatpush1.msra.mxu0 0.0
    %322 = vmatprep.subr.mxu0 0.0
    %323 = vmatpush1.msra.mxu0 0.0
    %324 = vmatprep.mubr.f32.mxu0 0.0
    %325 = vmatmul.mubr.f32.gmra.mrb[0].mxu0 %v258
    %v326 = vpop.f32.mrb[0].mxu0
    %v327 = vadd.f32 %v255, %v326
    %v328 = vpop.f32.mrb[0].mxu0
    %329 = vdwg.mxu0
    %vm330 = vcmp.ge.f32.partialorder %v327, 0.0
    %v331 = vmul.f32 %v327, 0.2
    %v332 = vsel %vm330, %v327, %v331
    %v333 = vld [vmem:[%s7] sm:$0xff]
    %v334 = vld [vmem:[%s7 + $0x8] sm:$0xff]
    %v335 = vld [vmem:[%s7 + $0x10] sm:$0xff]
    %v336 = vld [vmem:[%s7 + $0x18] sm:$0xff]
    %v337 = vld [vmem:[%s7 + $0x20] sm:$0xff]
    %v338 = vld [vmem:[%s7 + $0x28] sm:$0xff]
    %v339 = vld [vmem:[%s7 + $0x30] sm:$0xff]
    %v340 = vld [vmem:[%s7 + $0x38] sm:$0xff]
    %v341 = vld [vmem:[%s8] sm:$0x1]
    %v343 = vlaneseq
    %v344 = vshrl.u32 %v343, 7
    %v345 = vsub.s32 0, %v344
    %v346 = vrot.slane %v341, %v345
    %v349 = vsel %vm165, %v332, 0
    %351 = vmatprep.subr.mxu0 0.0
    %352 = vmatpush1.msra.mxu0 %v333
    %353 = vmatprep.subr.mxu0 0.0
    %354 = vmatpush1.msra.mxu0 %v334
    %355 = vmatprep.subr.mxu0 0.0
    %356 = vmatpush1.msra.mxu0 %v335
    %357 = vmatprep.subr.mxu0 0.0
    %358 = vmatpush1.msra.mxu0 %v336
    %359 = vmatprep.subr.mxu0 0.0
    %360 = vmatpush1.msra.mxu0 %v337
    %361 = vmatprep.subr.mxu0 0.0
    %362 = vmatpush1.msra.mxu0 %v338
    %363 = vmatprep.subr.mxu0 0.0
    %364 = vmatpush1.msra.mxu0 %v339
    %365 = vmatprep.subr.mxu0 0.0
    %366 = vmatpush1.msra.mxu0 %v340
    %367 = vmatprep.subr.mxu0 0.0
    %368 = vmatpush1.msra.mxu0 0.0
    %369 = vmatprep.subr.mxu0 0.0
    %370 = vmatpush1.msra.mxu0 0.0
    %371 = vmatprep.subr.mxu0 0.0
    %372 = vmatpush1.msra.mxu0 0.0
    %373 = vmatprep.subr.mxu0 0.0
    %374 = vmatpush1.msra.mxu0 0.0
    %375 = vmatprep.subr.mxu0 0.0
    %376 = vmatpush1.msra.mxu0 0.0
    %377 = vmatprep.subr.mxu0 0.0
    %378 = vmatpush1.msra.mxu0 0.0
    %379 = vmatprep.subr.mxu0 0.0
    %380 = vmatpush1.msra.mxu0 0.0
    %381 = vmatprep.subr.mxu0 0.0
    %382 = vmatpush1.msra.mxu0 0.0
    %383 = vmatprep.subr.mxu0 0.0
    %384 = vmatpush1.msra.mxu0 0.0
    %385 = vmatprep.subr.mxu0 0.0
    %386 = vmatpush1.msra.mxu0 0.0
    %387 = vmatprep.subr.mxu0 0.0
    %388 = vmatpush1.msra.mxu0 0.0
    %389 = vmatprep.subr.mxu0 0.0
    %390 = vmatpush1.msra.mxu0 0.0
    %391 = vmatprep.subr.mxu0 0.0
    %392 = vmatpush1.msra.mxu0 0.0
    %393 = vmatprep.subr.mxu0 0.0
    %394 = vmatpush1.msra.mxu0 0.0
    %395 = vmatprep.subr.mxu0 0.0
    %396 = vmatpush1.msra.mxu0 0.0
    %397 = vmatprep.subr.mxu0 0.0
    %398 = vmatpush1.msra.mxu0 0.0
    %399 = vmatprep.subr.mxu0 0.0
    %400 = vmatpush1.msra.mxu0 0.0
    %401 = vmatprep.subr.mxu0 0.0
    %402 = vmatpush1.msra.mxu0 0.0
    %403 = vmatprep.subr.mxu0 0.0
    %404 = vmatpush1.msra.mxu0 0.0
    %405 = vmatprep.subr.mxu0 0.0
    %406 = vmatpush1.msra.mxu0 0.0
    %407 = vmatprep.subr.mxu0 0.0
    %408 = vmatpush1.msra.mxu0 0.0
    %409 = vmatprep.subr.mxu0 0.0
    %410 = vmatpush1.msra.mxu0 0.0
    %411 = vmatprep.subr.mxu0 0.0
    %412 = vmatpush1.msra.mxu0 0.0
    %413 = vmatprep.subr.mxu0 0.0
    %414 = vmatpush1.msra.mxu0 0.0
    %415 = vmatprep.mubr.f32.mxu0 0.0
    %416 = vmatmul.mubr.f32.gmra.mrb[0].mxu0 %v349
    %v417 = vpop.f32.mrb[0].mxu0
    %v418 = vadd.f32 %v346, %v417
    %v419 = vpop.f32.mrb[0].mxu0
    %420 = vdwg.mxu0
    %vm421 = vcmask 123904
    %422 = vst.msk [vmem:[#allocation7] sm:$0x3] %vm421, %v418
    // Predicated region
    $region46: #{tpu_custom_call.1} parent=1 // pred_check
      _
    $region47: #{tpu_custom_call.1} parent=1 // pred_check_branch
      %424 = sbr.rel (0) target = $region49
    $region48: #{tpu_custom_call.1} parent=1 // pred_region
      %s426 = ssub.s32 32, 32
      %427 = vsyncadd [#allocation4], %s426
      %s429 = sshll.u32 [#allocation7], 4
      %s430 = int_to_ptr.vmem [resolvable:$true] %s429
      %432 = dma.vmem_to_hbm [thread:$0]  %s430, 32, %s9, [#allocation4]
    $region49: #{tpu_custom_call.1} parent=1 // pred_fallthru
      _
    // Predicated region
    $region50: #{tpu_custom_call.1} parent=1 // pred_check
      _
    $region51: #{tpu_custom_call.1} parent=1 // pred_check_branch
      %434 = sbr.rel (0) target = $region53
    $region52: #{tpu_custom_call.1} parent=1 // pred_region
      %435 = dma.done [#allocation4], 32
    $region53: #{tpu_custom_call.1} parent=1 // pred_fallthru
      _
    %436 = vsyncpa [#allocation3], 1
    %437 = vsyncpa [#allocation6], 1
    %438 = vsyncpa [#allocation4], 1

</llo_original>
